<compile_context>
chip_gen: v7x
topology: tpu7x:2x2x1
jax: 0.10.0
libtpu: 0.0.40
codegen_flags: <defaults>
</compile_context>

<pallas_src>
import functools

import jax
import jax.numpy as jnp
from jax.experimental import pallas as pl
from jax.experimental.pallas import tpu as pltpu

_LANE = 128
_ALIGN = 16          # sublane alignment that also satisfies bf16 packing


def _round_up(n, m):
    return ((n + m - 1) // m) * m


def _cdiv(a, b):
    return -(-a // b)


def _dqn_kernel(x_ref,
                w1_ref, b1_ref,
                w2_ref, b2_ref,
                w3_ref, b3_ref,
                w4_ref, b4_ref,
                o_ref):
    # Dots take bf16 operands and accumulate in f32 on the MXU; bias add and
    # ReLU stay in f32 on the VPU.
    x = x_ref[...].astype(jnp.bfloat16)

    h = jnp.dot(x, w1_ref[...], preferred_element_type=jnp.float32) + b1_ref[...]
    h = jnp.maximum(h, 0.0)
    # dropout(p=0.1): identity in eval mode.

    h = jnp.dot(h.astype(jnp.bfloat16), w2_ref[...],
                preferred_element_type=jnp.float32) + b2_ref[...]
    h = jnp.maximum(h, 0.0)

    h = jnp.dot(h.astype(jnp.bfloat16), w3_ref[...],
                preferred_element_type=jnp.float32) + b3_ref[...]
    h = jnp.maximum(h, 0.0)

    out = jnp.dot(h.astype(jnp.bfloat16), w4_ref[...],
                  preferred_element_type=jnp.float32) + b4_ref[...]
    o_ref[...] = out.astype(o_ref.dtype)        # bf16 store: lane-dense, half bytes


def _plan_batch(B, batch_tile):
    """Pick (tile, grid, padded_batch) so padding never overshoots by ~a tile
    and v7x's 2nd TensorCore gets at least one tile when B is large enough."""
    grid_n = max(1, _cdiv(B, batch_tile))
    if B >= 2 * _ALIGN:
        grid_n = max(grid_n, 2)      # >=2 steps so both v7x TCs participate
        if grid_n % 2:
            grid_n += 1              # balanced megacore split (cheap: <=16 rows/step pad)
    tb = _round_up(_cdiv(B, grid_n), _ALIGN)
    grid_n = _cdiv(B, tb)            # rounding may have reduced the steps needed
    return tb, grid_n, grid_n * tb


@functools.partial(jax.jit, static_argnames=("batch_tile",))
def competitive_dqn_forward_padded(x, params, *, batch_tile=2048):
    """Fused forward.  x: [B, state_size] (f32 or bf16).

    Returns bf16 [b_pad, act_p] with act_p = round_up(action_size, 128);
    only [:B, :action_size] is meaningful (padded rows/lanes are junk/zeros).
    """
    w1, b1 = params["fc1"]
    w2, b2 = params["fc2"]
    w3, b3 = params["fc3"]
    w4, b4 = params["fc4"]

    B, state_size = x.shape
    hidden = w1.shape[1]
    act_p = w4.shape[1]              # already lane-padded at param-prep time

    tb, grid_n, b_pad = _plan_batch(B, batch_tile)
    if b_pad != B:
        x = jnp.pad(x, ((0, b_pad - B), (0, 0)))

    weight_bytes = sum(
        int(w.size) * w.dtype.itemsize + int(b.size) * b.dtype.itemsize
        for w, b in (params[k] for k in ("fc1", "fc2", "fc3", "fc4")))

    # Only worth single-buffering the resident weights once they are large
    # (v7x 64 MiB physical VMEM); irrelevant (and skipped) at small hidden.
    single_buffer_weights = weight_bytes > (8 << 20)

    def const(shape):
        if single_buffer_weights:
            return pl.BlockSpec(shape, lambda i: (0, 0),
                                pipeline_mode=pl.Buffered(1))
        return pl.BlockSpec(shape, lambda i: (0, 0))

    # VMEM budget: resident weights (x2 unless Buffered(1)), double-buffered
    # x/out streams, a few activation temporaries, plus headroom.  Only set an
    # explicit limit when it would exceed v5e's 16 MiB scoped default.
    stream_bytes = 2 * tb * (state_size * x.dtype.itemsize + act_p * 2)
    act_bytes = 4 * tb * max(hidden, act_p) * 4
    vmem_need = (weight_bytes * (1 if single_buffer_weights else 2)
                 + stream_bytes + act_bytes + (2 << 20))
    vmem_limit = int(min(vmem_need, 100 << 20)) if vmem_need > (14 << 20) else None

    flops = 2 * b_pad * (state_size * hidden + 2 * hidden * hidden + hidden * act_p)
    bytes_accessed = (int(x.size) * x.dtype.itemsize + weight_bytes
                      + b_pad * act_p * 2)

    return pl.pallas_call(
        _dqn_kernel,
        out_shape=jax.ShapeDtypeStruct((b_pad, act_p), jnp.bfloat16),
        grid=(grid_n,),
        in_specs=[
            pl.BlockSpec((tb, state_size), lambda i: (i, 0)),
            const(w1.shape), const(b1.shape),
            const(w2.shape), const(b2.shape),
            const(w3.shape), const(b3.shape),
            const(w4.shape), const(b4.shape),
        ],
        out_specs=pl.BlockSpec((tb, act_p), lambda i: (i, 0)),
        compiler_params=pltpu.CompilerParams(
            dimension_semantics=("parallel",),
            vmem_limit_bytes=vmem_limit),
        cost_estimate=pl.CostEstimate(flops=flops, transcendentals=0,
                                      bytes_accessed=bytes_accessed),
    )(x, w1, b1, w2, b2, w3, b3, w4, b4)


def competitive_dqn_forward(x, params, action_size, *, batch_tile=2048):
    """Convenience wrapper returning the exact [B, action_size] bf16 result.
    Hot paths that can consume the padded layout should call
    competitive_dqn_forward_padded directly to skip this slice pass."""
    out = competitive_dqn_forward_padded(x, params, batch_tile=batch_tile)
    return out[:x.shape[0], :action_size]


def prepare_params(raw_params):
    """raw_params: name -> (w [out, in] f32, b [out] f32) in PyTorch layout.

    Produces kernel-layout params: bf16 [in, out] weights and f32 [1, out]
    biases, with fc4 lane-padded (zero columns) to a multiple of 128.  Done
    once here, outside the jitted forward."""
    prepared = {}
    for name in ("fc1", "fc2", "fc3", "fc4"):
        w, b = raw_params[name]
        wt = jnp.asarray(w, jnp.float32).T            # [in, out]
        bb = jnp.asarray(b, jnp.float32).reshape(1, -1)
        if name == "fc4":
            act = wt.shape[1]
            act_p = _round_up(act, _LANE)
            if act_p != act:
                wt = jnp.pad(wt, ((0, 0), (0, act_p - act)))
                bb = jnp.pad(bb, ((0, 0), (0, act_p - act)))
        prepared[name] = (wt.astype(jnp.bfloat16), bb)
    return prepared


def init_params(key, state_size, action_size, hidden_size):
    """Deterministic init mimicking nn.Linear's U(-1/sqrt(fan_in), 1/sqrt(fan_in)),
    returned already in kernel layout (bf16 [in,out], padded fc4)."""
    dims = [("fc1", state_size, hidden_size),
            ("fc2", hidden_size, hidden_size),
            ("fc3", hidden_size, hidden_size),
            ("fc4", hidden_size, action_size)]
    raw = {}
    for name, fan_in, fan_out in dims:
        key, kw, kb = jax.random.split(key, 3)
        bound = 1.0 / (float(fan_in) ** 0.5)
        w = jax.random.uniform(kw, (fan_out, fan_in), jnp.float32, -bound, bound)
        b = jax.random.uniform(kb, (fan_out,), jnp.float32, -bound, bound)
        raw[name] = (w, b)
    return prepare_params(raw)


def reference_forward(x, params):
    """Pure-JAX reference mirroring the kernel numerics (bf16 dot operands,
    f32 accumulation, f32 bias add / ReLU).  Returns f32 [B, act_p]."""
    h = x
    for name in ("fc1", "fc2", "fc3"):
        w, b = params[name]
        h = jnp.dot(h.astype(jnp.bfloat16), w,
                    preferred_element_type=jnp.float32) + b
        h = jnp.maximum(h, 0.0)
    w, b = params["fc4"]
    return jnp.dot(h.astype(jnp.bfloat16), w,
                   preferred_element_type=jnp.float32) + b


if __name__ == "__main__":
    # Small shapes consistent with the module's forward.
    batch = 8
    state_size = 32
    action_size = 8
    hidden_size = 128

    key = jax.random.PRNGKey(0)
    kx, kp = jax.random.split(key)
    x = jax.random.normal(kx, (batch, state_size), jnp.float32)
    params = init_params(kp, state_size, action_size, hidden_size)

    out = competitive_dqn_forward(x, params, action_size)
    out = jax.block_until_ready(out)

    ref = reference_forward(x, params)[:, :action_size]
    assert out.shape == (batch, action_size), out.shape
    assert jnp.allclose(out.astype(jnp.float32), ref, atol=3e-2, rtol=2e-2), \
        "mismatch vs reference"

    print("KERNEL_OK")
</pallas_src>

<mosaic_0001>
module attributes {stable_mosaic.version = 11 : i64} {
  func.func @_dqn_kernel(%arg0: i32, %arg1: memref<16x32xf32, #tpu.memory_space<vmem>>, %arg2: memref<32x128xbf16, #tpu.memory_space<vmem>>, %arg3: memref<1x128xf32, #tpu.memory_space<vmem>>, %arg4: memref<128x128xbf16, #tpu.memory_space<vmem>>, %arg5: memref<1x128xf32, #tpu.memory_space<vmem>>, %arg6: memref<128x128xbf16, #tpu.memory_space<vmem>>, %arg7: memref<1x128xf32, #tpu.memory_space<vmem>>, %arg8: memref<128x128xbf16, #tpu.memory_space<vmem>>, %arg9: memref<1x128xf32, #tpu.memory_space<vmem>>, %arg10: memref<16x128xbf16, #tpu.memory_space<vmem>>) attributes {dimension_semantics = [#tpu.dimension_semantics<parallel>], iteration_bounds = array<i64: 1>, scalar_prefetch = 0 : i64, scratch_operands = 0 : i64, tpu.core_type = #tpu.core_type<tc>, window_params = [{transform_indices = @transform_0, window_bounds = array<i64: 16, 32>}, {pipeline_mode = #tpu.pipeline_mode<synchronous>, transform_indices = @transform_1, window_bounds = array<i64: 32, 128>}, {pipeline_mode = #tpu.pipeline_mode<synchronous>, transform_indices = @transform_2, window_bounds = array<i64: 1, 128>}, {pipeline_mode = #tpu.pipeline_mode<synchronous>, transform_indices = @transform_3, window_bounds = array<i64: 128, 128>}, {pipeline_mode = #tpu.pipeline_mode<synchronous>, transform_indices = @transform_4, window_bounds = array<i64: 1, 128>}, {pipeline_mode = #tpu.pipeline_mode<synchronous>, transform_indices = @transform_5, window_bounds = array<i64: 128, 128>}, {pipeline_mode = #tpu.pipeline_mode<synchronous>, transform_indices = @transform_6, window_bounds = array<i64: 1, 128>}, {pipeline_mode = #tpu.pipeline_mode<synchronous>, transform_indices = @transform_7, window_bounds = array<i64: 128, 128>}, {pipeline_mode = #tpu.pipeline_mode<synchronous>, transform_indices = @transform_8, window_bounds = array<i64: 1, 128>}, {transform_indices = @transform_9, window_bounds = array<i64: 16, 128>}]} {
    %c0 = arith.constant 0 : index
    %c0_0 = arith.constant 0 : index
    %0 = vector.load %arg1[%c0, %c0_0] : memref<16x32xf32, #tpu.memory_space<vmem>>, vector<16x32xf32>
    %1 = arith.truncf %0 : vector<16x32xf32> to vector<16x32xbf16>
    %c0_1 = arith.constant 0 : index
    %c0_2 = arith.constant 0 : index
    %2 = vector.load %arg2[%c0_1, %c0_2] : memref<32x128xbf16, #tpu.memory_space<vmem>>, vector<32x128xbf16>
    %cst = arith.constant dense<0.000000e+00> : vector<16x128xf32>
    %3 = tpu.matmul %1, %2, %cst {dimension_numbers = #tpu.dot_dimension_numbers<[1], [0], [0], [1], [0, 0, 1, 1], [], []>} : vector<16x32xbf16>, vector<32x128xbf16>, vector<16x128xf32> -> vector<16x128xf32>
    %c0_3 = arith.constant 0 : index
    %c0_4 = arith.constant 0 : index
    %4 = vector.load %arg3[%c0_3, %c0_4] : memref<1x128xf32, #tpu.memory_space<vmem>>, vector<1x128xf32>
    %5 = vector.broadcast %4 : vector<1x128xf32> to vector<16x128xf32>
    %6 = arith.addf %3, %5 : vector<16x128xf32>
    %cst_5 = arith.constant 0.000000e+00 : f32
    %7 = vector.broadcast %cst_5 : f32 to vector<16x128xf32>
    %8 = arith.maximumf %6, %7 : vector<16x128xf32>
    %9 = arith.truncf %8 : vector<16x128xf32> to vector<16x128xbf16>
    %c0_6 = arith.constant 0 : index
    %c0_7 = arith.constant 0 : index
    %10 = vector.load %arg4[%c0_6, %c0_7] : memref<128x128xbf16, #tpu.memory_space<vmem>>, vector<128x128xbf16>
    %cst_8 = arith.constant dense<0.000000e+00> : vector<16x128xf32>
    %11 = tpu.matmul %9, %10, %cst_8 {dimension_numbers = #tpu.dot_dimension_numbers<[1], [0], [0], [1], [0, 0, 1, 1], [], []>} : vector<16x128xbf16>, vector<128x128xbf16>, vector<16x128xf32> -> vector<16x128xf32>
    %c0_9 = arith.constant 0 : index
    %c0_10 = arith.constant 0 : index
    %12 = vector.load %arg5[%c0_9, %c0_10] : memref<1x128xf32, #tpu.memory_space<vmem>>, vector<1x128xf32>
    %13 = vector.broadcast %12 : vector<1x128xf32> to vector<16x128xf32>
    %14 = arith.addf %11, %13 : vector<16x128xf32>
    %cst_11 = arith.constant 0.000000e+00 : f32
    %15 = vector.broadcast %cst_11 : f32 to vector<16x128xf32>
    %16 = arith.maximumf %14, %15 : vector<16x128xf32>
    %17 = arith.truncf %16 : vector<16x128xf32> to vector<16x128xbf16>
    %c0_12 = arith.constant 0 : index
    %c0_13 = arith.constant 0 : index
    %18 = vector.load %arg6[%c0_12, %c0_13] : memref<128x128xbf16, #tpu.memory_space<vmem>>, vector<128x128xbf16>
    %cst_14 = arith.constant dense<0.000000e+00> : vector<16x128xf32>
    %19 = tpu.matmul %17, %18, %cst_14 {dimension_numbers = #tpu.dot_dimension_numbers<[1], [0], [0], [1], [0, 0, 1, 1], [], []>} : vector<16x128xbf16>, vector<128x128xbf16>, vector<16x128xf32> -> vector<16x128xf32>
    %c0_15 = arith.constant 0 : index
    %c0_16 = arith.constant 0 : index
    %20 = vector.load %arg7[%c0_15, %c0_16] : memref<1x128xf32, #tpu.memory_space<vmem>>, vector<1x128xf32>
    %21 = vector.broadcast %20 : vector<1x128xf32> to vector<16x128xf32>
    %22 = arith.addf %19, %21 : vector<16x128xf32>
    %cst_17 = arith.constant 0.000000e+00 : f32
    %23 = vector.broadcast %cst_17 : f32 to vector<16x128xf32>
    %24 = arith.maximumf %22, %23 : vector<16x128xf32>
    %25 = arith.truncf %24 : vector<16x128xf32> to vector<16x128xbf16>
    %c0_18 = arith.constant 0 : index
    %c0_19 = arith.constant 0 : index
    %26 = vector.load %arg8[%c0_18, %c0_19] : memref<128x128xbf16, #tpu.memory_space<vmem>>, vector<128x128xbf16>
    %cst_20 = arith.constant dense<0.000000e+00> : vector<16x128xf32>
    %27 = tpu.matmul %25, %26, %cst_20 {dimension_numbers = #tpu.dot_dimension_numbers<[1], [0], [0], [1], [0, 0, 1, 1], [], []>} : vector<16x128xbf16>, vector<128x128xbf16>, vector<16x128xf32> -> vector<16x128xf32>
    %c0_21 = arith.constant 0 : index
    %c0_22 = arith.constant 0 : index
    %28 = vector.load %arg9[%c0_21, %c0_22] : memref<1x128xf32, #tpu.memory_space<vmem>>, vector<1x128xf32>
    %29 = vector.broadcast %28 : vector<1x128xf32> to vector<16x128xf32>
    %30 = arith.addf %27, %29 : vector<16x128xf32>
    %31 = arith.truncf %30 : vector<16x128xf32> to vector<16x128xbf16>
    %c0_23 = arith.constant 0 : index
    %c0_24 = arith.constant 0 : index
    %32 = vector.load %arg10[%c0_23, %c0_24] : memref<16x128xbf16, #tpu.memory_space<vmem>>, vector<16x128xbf16>
    tpu.vector_store %arg10[%c0_23, %c0_24], %31 {strides = array<i32>} : memref<16x128xbf16, #tpu.memory_space<vmem>>, vector<16x128xbf16>,
    return
  }
  func.func @transform_0(%arg0: i32) -> (i32, i32) {
    %c0_i32 = arith.constant 0 : i32
    %c0_i32_0 = arith.constant 0 : i32
    return %arg0, %c0_i32 : i32, i32
  }
  func.func @transform_1(%arg0: i32) -> (i32, i32) {
    %c0_i32 = arith.constant 0 : i32
    %c0_i32_0 = arith.constant 0 : i32
    %c0_i32_1 = arith.constant 0 : i32
    return %c0_i32, %c0_i32_0 : i32, i32
  }
  func.func @transform_2(%arg0: i32) -> (i32, i32) {
    %c0_i32 = arith.constant 0 : i32
    %c0_i32_0 = arith.constant 0 : i32
    %c0_i32_1 = arith.constant 0 : i32
    return %c0_i32, %c0_i32_0 : i32, i32
  }
  func.func @transform_3(%arg0: i32) -> (i32, i32) {
    %c0_i32 = arith.constant 0 : i32
    %c0_i32_0 = arith.constant 0 : i32
    %c0_i32_1 = arith.constant 0 : i32
    return %c0_i32, %c0_i32_0 : i32, i32
  }
  func.func @transform_4(%arg0: i32) -> (i32, i32) {
    %c0_i32 = arith.constant 0 : i32
    %c0_i32_0 = arith.constant 0 : i32
    %c0_i32_1 = arith.constant 0 : i32
    return %c0_i32, %c0_i32_0 : i32, i32
  }
  func.func @transform_5(%arg0: i32) -> (i32, i32) {
    %c0_i32 = arith.constant 0 : i32
    %c0_i32_0 = arith.constant 0 : i32
    %c0_i32_1 = arith.constant 0 : i32
    return %c0_i32, %c0_i32_0 : i32, i32
  }
  func.func @transform_6(%arg0: i32) -> (i32, i32) {
    %c0_i32 = arith.constant 0 : i32
    %c0_i32_0 = arith.constant 0 : i32
    %c0_i32_1 = arith.constant 0 : i32
    return %c0_i32, %c0_i32_0 : i32, i32
  }
  func.func @transform_7(%arg0: i32) -> (i32, i32) {
    %c0_i32 = arith.constant 0 : i32
    %c0_i32_0 = arith.constant 0 : i32
    %c0_i32_1 = arith.constant 0 : i32
    return %c0_i32, %c0_i32_0 : i32, i32
  }
  func.func @transform_8(%arg0: i32) -> (i32, i32) {
    %c0_i32 = arith.constant 0 : i32
    %c0_i32_0 = arith.constant 0 : i32
    %c0_i32_1 = arith.constant 0 : i32
    return %c0_i32, %c0_i32_0 : i32, i32
  }
  func.func @transform_9(%arg0: i32) -> (i32, i32) {
    %c0_i32 = arith.constant 0 : i32
    %c0_i32_0 = arith.constant 0 : i32
    return %arg0, %c0_i32 : i32, i32
  }
}

</mosaic_0001>

<llo_original>
// kernel: competitive_dqn_forward_padded.1
$region0: #{competitive_dqn_forward_padded.1}
  #allocation0 [shape = 'u32[]', space=smem, size = 0x4, offset = 0x4, fixed_abs, tag = 'smem constant byte address 0x4 - core index']
  #allocation1 [shape = 'u32[144,128]{1,0:T(1,128)}', space=vmem, size = 0x12000, scoped, tag = 'internal scratch']
  %s0 = inlined_call_operand.vmem [shape: f32[16,32], index: 0, kind: input, shape index: {}]
  %s1 = inlined_call_operand.vmem [shape: bf16[32,128], index: 1, kind: input, shape index: {}]
  %s2 = inlined_call_operand.vmem [shape: f32[1,128], index: 2, kind: input, shape index: {}]
  %s3 = inlined_call_operand.hbm [shape: bf16[128,128], index: 3, kind: input, shape index: {}]
  %s4 = inlined_call_operand.vmem [shape: f32[1,128], index: 4, kind: input, shape index: {}]
  %s5 = inlined_call_operand.hbm [shape: bf16[128,128], index: 5, kind: input, shape index: {}]
  %s6 = inlined_call_operand.vmem [shape: f32[1,128], index: 6, kind: input, shape index: {}]
  %s7 = inlined_call_operand.hbm [shape: bf16[128,128], index: 7, kind: input, shape index: {}]
  %s8 = inlined_call_operand.vmem [shape: f32[1,128], index: 8, kind: input, shape index: {}]
  %s9 = inlined_call_operand.hbm [shape: bf16[16,128], index: 9, kind: output, shape index: {}]
  %s10 = sld [smem:[#allocation0]]
  $region58: #{competitive_dqn_forward_padded.1} parent=0
    _
  %s12 = ssub.s32 1, %s10
  %s13 = scalar_select 0, %s12, %s10
  $region1: #{competitive_dqn_forward_padded.1} parent=0
    #allocation2 [shape = 'u8[32768]{0}', space=vmem, size = 0x8000, scoped, tag = 'input window, operand 3, single buffered']
    #allocation3 [shape = 's32[1]{0}', space=sflag, size = 0x4, scoped, tag = 'scoped memory for competitive_dqn_forward_padded.1']
    #allocation4 [shape = 's32[1]{0}', space=sflag, size = 0x4, scoped, tag = 'scoped memory for competitive_dqn_forward_padded.1']
    #allocation5 [shape = 'u8[32768]{0}', space=vmem, size = 0x8000, scoped, tag = 'input window, operand 5, single buffered']
    #allocation6 [shape = 's32[1]{0}', space=sflag, size = 0x4, scoped, tag = 'scoped memory for competitive_dqn_forward_padded.1']
    #allocation7 [shape = 'u8[32768]{0}', space=vmem, size = 0x8000, scoped, tag = 'input window, operand 7, single buffered']
    #allocation8 [shape = 'u8[4096]{0}', space=vmem, size = 0x1000, scoped, tag = 'output window, operand 0, single buffered']
    %14 = vsyncpa [#allocation3], 0
    %15 = vsyncpa [#allocation6], 0
    %16 = vsyncpa [#allocation4], 0
    // Predicated region
    $region2: #{competitive_dqn_forward_padded.1} parent=1 // pred_check
      _
    $region3: #{competitive_dqn_forward_padded.1} parent=1 // pred_check_branch
      %18 = sbr.rel (0) target = $region5
    $region4: #{competitive_dqn_forward_padded.1} parent=1 // pred_region
      _
    $region5: #{competitive_dqn_forward_padded.1} parent=1 // pred_fallthru
      _
    // Predicated region
    $region6: #{competitive_dqn_forward_padded.1} parent=1 // pred_check
      _
    $region7: #{competitive_dqn_forward_padded.1} parent=1 // pred_check_branch
      %20 = sbr.rel (0) target = $region9
    $region8: #{competitive_dqn_forward_padded.1} parent=1 // pred_region
      _
    $region9: #{competitive_dqn_forward_padded.1} parent=1 // pred_fallthru
      _
    // Predicated region
    $region10: #{competitive_dqn_forward_padded.1} parent=1 // pred_check
      _
    $region11: #{competitive_dqn_forward_padded.1} parent=1 // pred_check_branch
      %22 = sbr.rel (0) target = $region13
    $region12: #{competitive_dqn_forward_padded.1} parent=1 // pred_region
      _
    $region13: #{competitive_dqn_forward_padded.1} parent=1 // pred_fallthru
      _
    // Predicated region
    $region14: #{competitive_dqn_forward_padded.1} parent=1 // pred_check
      _
    $region15: #{competitive_dqn_forward_padded.1} parent=1 // pred_check_branch
      %24 = sbr.rel (0) target = $region17
    $region16: #{competitive_dqn_forward_padded.1} parent=1 // pred_region
      %s26 = ssub.s32 1024, 1024
      %27 = vsyncadd [#allocation3], %s26
      %s28 = sshll.u32 [#allocation2], 4
      %s29 = int_to_ptr.vmem [resolvable:$true] %s28
      %34 = dma.hbm_to_vmem [thread:$0]  %s3, 1024, %s29, [#allocation3], 64, 64, 4
    $region17: #{competitive_dqn_forward_padded.1} parent=1 // pred_fallthru
      _
    // Predicated region
    $region18: #{competitive_dqn_forward_padded.1} parent=1 // pred_check
      _
    $region19: #{competitive_dqn_forward_padded.1} parent=1 // pred_check_branch
      %36 = sbr.rel (0) target = $region21
    $region20: #{competitive_dqn_forward_padded.1} parent=1 // pred_region
      _
    $region21: #{competitive_dqn_forward_padded.1} parent=1 // pred_fallthru
      _
    // Predicated region
    $region22: #{competitive_dqn_forward_padded.1} parent=1 // pred_check
      _
    $region23: #{competitive_dqn_forward_padded.1} parent=1 // pred_check_branch
      %38 = sbr.rel (0) target = $region25
    $region24: #{competitive_dqn_forward_padded.1} parent=1 // pred_region
      %s40 = ssub.s32 1024, 1024
      %41 = vsyncadd [#allocation6], %s40
      %s42 = sshll.u32 [#allocation5], 4
      %s43 = int_to_ptr.vmem [resolvable:$true] %s42
      %48 = dma.hbm_to_vmem [thread:$0]  %s5, 1024, %s43, [#allocation6], 64, 64, 4
    $region25: #{competitive_dqn_forward_padded.1} parent=1 // pred_fallthru
      _
    // Predicated region
    $region26: #{competitive_dqn_forward_padded.1} parent=1 // pred_check
      _
    $region27: #{competitive_dqn_forward_padded.1} parent=1 // pred_check_branch
      %50 = sbr.rel (0) target = $region29
    $region28: #{competitive_dqn_forward_padded.1} parent=1 // pred_region
      _
    $region29: #{competitive_dqn_forward_padded.1} parent=1 // pred_fallthru
      _
    // Predicated region
    $region30: #{competitive_dqn_forward_padded.1} parent=1 // pred_check
      _
    $region31: #{competitive_dqn_forward_padded.1} parent=1 // pred_check_branch
      %52 = sbr.rel (0) target = $region33
    $region32: #{competitive_dqn_forward_padded.1} parent=1 // pred_region
      %s54 = ssub.s32 1024, 1024
      %55 = vsyncadd [#allocation6], %s54
      %s56 = sshll.u32 [#allocation7], 4
      %s57 = int_to_ptr.vmem [resolvable:$true] %s56
      %62 = dma.hbm_to_vmem [thread:$0]  %s7, 1024, %s57, [#allocation6], 64, 64, 4
    $region33: #{competitive_dqn_forward_padded.1} parent=1 // pred_fallthru
      _
    // Predicated region
    $region34: #{competitive_dqn_forward_padded.1} parent=1 // pred_check
      _
    $region35: #{competitive_dqn_forward_padded.1} parent=1 // pred_check_branch
      %64 = sbr.rel (0) target = $region37
    $region36: #{competitive_dqn_forward_padded.1} parent=1 // pred_region
      _
    $region37: #{competitive_dqn_forward_padded.1} parent=1 // pred_fallthru
      _
    // Predicated region
    $region38: #{competitive_dqn_forward_padded.1} parent=1 // pred_check
      _
    $region39: #{competitive_dqn_forward_padded.1} parent=1 // pred_check_branch
      %66 = sbr.rel (0) target = $region41
    $region40: #{competitive_dqn_forward_padded.1} parent=1 // pred_region
      %67 = dma.done [#allocation3], 1024
    $region41: #{competitive_dqn_forward_padded.1} parent=1 // pred_fallthru
      _
    // Predicated region
    $region42: #{competitive_dqn_forward_padded.1} parent=1 // pred_check
      _
    $region43: #{competitive_dqn_forward_padded.1} parent=1 // pred_check_branch
      %69 = sbr.rel (0) target = $region45
    $region44: #{competitive_dqn_forward_padded.1} parent=1 // pred_region
      %70 = dma.done [#allocation6], 1024
    $region45: #{competitive_dqn_forward_padded.1} parent=1 // pred_fallthru
      _
    // Predicated region
    $region46: #{competitive_dqn_forward_padded.1} parent=1 // pred_check
      _
    $region47: #{competitive_dqn_forward_padded.1} parent=1 // pred_check_branch
      %72 = sbr.rel (0) target = $region49
    $region48: #{competitive_dqn_forward_padded.1} parent=1 // pred_region
      %73 = dma.done [#allocation6], 1024
    $region49: #{competitive_dqn_forward_padded.1} parent=1 // pred_fallthru
      _
    %v75 = vld [vmem:[%s0] sm:$0xff]
    %v76 = vld [vmem:[%s0 + $0x8] sm:$0xff]
    %v77 = vpack.c.bf16 %v76, %v75
    %v78 = vld [vmem:[%s1] sm:$0xf]
    %v79 = vld [vmem:[%s1 + $0x4] sm:$0xf]
    %v80 = vld [vmem:[%s1 + $0x8] sm:$0xf]
    %v81 = vld [vmem:[%s1 + $0xc] sm:$0xf]
    %v82 = vld [vmem:[%s2] sm:$0x1]
    %v84 = vlaneseq
    %v85 = vshrl.u32 %v84, 7
    %v86 = vsub.s32 0, %v85
    %v87 = vrot.slane %v82, %v86
    %v93 = vunpack.c.l.b16 %v78
    %v94 = vunpack.c.l.b16 %v79
    %v95 = vunpack.c.l.b16 %v80
    %v96 = vunpack.c.l.b16 %v81
    %v97 = vpack.c.b16 %v94, %v93
    %v98 = vpack.c.b16 %v96, %v95
    %vm101 = vcmask 261120
    %v103 = vsel %vm101, %v77, 0
    %105 = vmatprep.subr.bf16.mxu0 0
    %106 = vmatpush1.bf16.msra.mxu0 %v97
    %107 = vmatprep.subr.bf16.mxu0 0
    %108 = vmatpush1.bf16.msra.mxu0 %v98
    %109 = vmatprep.subr.bf16.mxu0 0
    %110 = vmatpush1.bf16.msra.mxu0 0
    %111 = vmatprep.subr.bf16.mxu0 0
    %112 = vmatpush1.bf16.msra.mxu0 0
    %113 = vmatprep.subr.bf16.mxu0 0
    %114 = vmatpush1.bf16.msra.mxu0 0
    %115 = vmatprep.subr.bf16.mxu0 0
    %116 = vmatpush1.bf16.msra.mxu0 0
    %117 = vmatprep.subr.bf16.mxu0 0
    %118 = vmatpush1.bf16.msra.mxu0 0
    %119 = vmatprep.subr.bf16.mxu0 0
    %120 = vmatpush1.bf16.msra.mxu0 0
    %121 = vmatprep.subr.bf16.mxu0 0
    %122 = vmatpush1.bf16.msra.mxu0 0
    %123 = vmatprep.subr.bf16.mxu0 0
    %124 = vmatpush1.bf16.msra.mxu0 0
    %125 = vmatprep.subr.bf16.mxu0 0
    %126 = vmatpush1.bf16.msra.mxu0 0
    %127 = vmatprep.subr.bf16.mxu0 0
    %128 = vmatpush1.bf16.msra.mxu0 0
    %129 = vmatprep.subr.bf16.mxu0 0
    %130 = vmatpush1.bf16.msra.mxu0 0
    %131 = vmatprep.subr.bf16.mxu0 0
    %132 = vmatpush1.bf16.msra.mxu0 0
    %133 = vmatprep.subr.bf16.mxu0 0
    %134 = vmatpush1.bf16.msra.mxu0 0
    %135 = vmatprep.subr.bf16.mxu0 0
    %136 = vmatpush1.bf16.msra.mxu0 0
    %137 = vmatprep.mubr.bf16.mxu0 0
    %138 = vmatmul.mubr.bf16.gmra.mrb[0].mxu0 %v103
    %v139 = vpop.f32.mrb[0].mxu0
    %v140 = vadd.f32 %v87, %v139
    %v141 = vpop.f32.mrb[0].mxu0
    %v142 = vpop.f32.mrb[0].mxu0
    %v143 = vadd.f32 %v87, %v142
    %v144 = vpop.f32.mrb[0].mxu0
    %145 = vdwg.mxu0
    %v146 = vmax.f32 %v140, 0.0
    %v147 = vmax.f32 %v143, 0.0
    %v148 = vpack.c.bf16 %v147, %v146
    %v149 = vld [vmem:[#allocation2] sm:$0xf]
    %v150 = vld [vmem:[#allocation2 + $0x4] sm:$0xf]
    %v151 = vld [vmem:[#allocation2 + $0x8] sm:$0xf]
    %v152 = vld [vmem:[#allocation2 + $0xc] sm:$0xf]
    %v153 = vld [vmem:[#allocation2 + $0x10] sm:$0xf]
    %v154 = vld [vmem:[#allocation2 + $0x14] sm:$0xf]
    %v155 = vld [vmem:[#allocation2 + $0x18] sm:$0xf]
    %v156 = vld [vmem:[#allocation2 + $0x1c] sm:$0xf]
    %v157 = vld [vmem:[#allocation2 + $0x20] sm:$0xf]
    %v158 = vld [vmem:[#allocation2 + $0x24] sm:$0xf]
    %v159 = vld [vmem:[#allocation2 + $0x28] sm:$0xf]
    %v160 = vld [vmem:[#allocation2 + $0x2c] sm:$0xf]
    %v161 = vld [vmem:[#allocation2 + $0x30] sm:$0xf]
    %v162 = vld [vmem:[#allocation2 + $0x34] sm:$0xf]
    %v163 = vld [vmem:[#allocation2 + $0x38] sm:$0xf]
    %v164 = vld [vmem:[#allocation2 + $0x3c] sm:$0xf]
    %v165 = vld [vmem:[%s4] sm:$0x1]
    %v167 = vlaneseq
    %v168 = vshrl.u32 %v167, 7
    %v169 = vsub.s32 0, %v168
    %v170 = vrot.slane %v165, %v169
    %v188 = vunpack.c.l.b16 %v149
    %v189 = vunpack.c.l.b16 %v150
    %v190 = vunpack.c.l.b16 %v151
    %v191 = vunpack.c.l.b16 %v152
    %v192 = vunpack.c.l.b16 %v153
    %v193 = vunpack.c.l.b16 %v154
    %v194 = vunpack.c.l.b16 %v155
    %v195 = vunpack.c.l.b16 %v156
    %v196 = vunpack.c.l.b16 %v157
    %v197 = vunpack.c.l.b16 %v158
    %v198 = vunpack.c.l.b16 %v159
    %v199 = vunpack.c.l.b16 %v160
    %v200 = vunpack.c.l.b16 %v161
    %v201 = vunpack.c.l.b16 %v162
    %v202 = vunpack.c.l.b16 %v163
    %v203 = vunpack.c.l.b16 %v164
    %v204 = vpack.c.b16 %v189, %v188
    %v205 = vpack.c.b16 %v191, %v190
    %v206 = vpack.c.b16 %v193, %v192
    %v207 = vpack.c.b16 %v195, %v194
    %v208 = vpack.c.b16 %v197, %v196
    %v209 = vpack.c.b16 %v199, %v198
    %v210 = vpack.c.b16 %v201, %v200
    %v211 = vpack.c.b16 %v203, %v202
    %220 = vmatprep.subr.bf16.mxu0 0
    %221 = vmatpush1.bf16.msra.mxu0 %v204
    %222 = vmatprep.subr.bf16.mxu0 0
    %223 = vmatpush1.bf16.msra.mxu0 %v205
    %224 = vmatprep.subr.bf16.mxu0 0
    %225 = vmatpush1.bf16.msra.mxu0 %v206
    %226 = vmatprep.subr.bf16.mxu0 0
    %227 = vmatpush1.bf16.msra.mxu0 %v207
    %228 = vmatprep.subr.bf16.mxu0 0
    %229 = vmatpush1.bf16.msra.mxu0 %v208
    %230 = vmatprep.subr.bf16.mxu0 0
    %231 = vmatpush1.bf16.msra.mxu0 %v209
    %232 = vmatprep.subr.bf16.mxu0 0
    %233 = vmatpush1.bf16.msra.mxu0 %v210
    %234 = vmatprep.subr.bf16.mxu0 0
    %235 = vmatpush1.bf16.msra.mxu0 %v211
    %236 = vmatprep.subr.bf16.mxu0 0
    %237 = vmatpush1.bf16.msra.mxu0 0
    %238 = vmatprep.subr.bf16.mxu0 0
    %239 = vmatpush1.bf16.msra.mxu0 0
    %240 = vmatprep.subr.bf16.mxu0 0
    %241 = vmatpush1.bf16.msra.mxu0 0
    %242 = vmatprep.subr.bf16.mxu0 0
    %243 = vmatpush1.bf16.msra.mxu0 0
    %244 = vmatprep.subr.bf16.mxu0 0
    %245 = vmatpush1.bf16.msra.mxu0 0
    %246 = vmatprep.subr.bf16.mxu0 0
    %247 = vmatpush1.bf16.msra.mxu0 0
    %248 = vmatprep.subr.bf16.mxu0 0
    %249 = vmatpush1.bf16.msra.mxu0 0
    %250 = vmatprep.subr.bf16.mxu0 0
    %251 = vmatpush1.bf16.msra.mxu0 0
    %252 = vmatprep.mubr.bf16.mxu0 0
    %253 = vmatmul.mubr.bf16.gmra.mrb[0].mxu0 %v148
    %v254 = vpop.f32.mrb[0].mxu0
    %v255 = vadd.f32 %v170, %v254
    %v256 = vpop.f32.mrb[0].mxu0
    %v257 = vpop.f32.mrb[0].mxu0
    %v258 = vadd.f32 %v170, %v257
    %v259 = vpop.f32.mrb[0].mxu0
    %260 = vdwg.mxu0
    %v261 = vmax.f32 %v255, 0.0
    %v262 = vmax.f32 %v258, 0.0
    %v263 = vpack.c.bf16 %v262, %v261
    %v264 = vld [vmem:[#allocation5] sm:$0xf]
    %v265 = vld [vmem:[#allocation5 + $0x4] sm:$0xf]
    %v266 = vld [vmem:[#allocation5 + $0x8] sm:$0xf]
    %v267 = vld [vmem:[#allocation5 + $0xc] sm:$0xf]
    %v268 = vld [vmem:[#allocation5 + $0x10] sm:$0xf]
    %v269 = vld [vmem:[#allocation5 + $0x14] sm:$0xf]
    %v270 = vld [vmem:[#allocation5 + $0x18] sm:$0xf]
    %v271 = vld [vmem:[#allocation5 + $0x1c] sm:$0xf]
    %v272 = vld [vmem:[#allocation5 + $0x20] sm:$0xf]
    %v273 = vld [vmem:[#allocation5 + $0x24] sm:$0xf]
    %v274 = vld [vmem:[#allocation5 + $0x28] sm:$0xf]
    %v275 = vld [vmem:[#allocation5 + $0x2c] sm:$0xf]
    %v276 = vld [vmem:[#allocation5 + $0x30] sm:$0xf]
    %v277 = vld [vmem:[#allocation5 + $0x34] sm:$0xf]
    %v278 = vld [vmem:[#allocation5 + $0x38] sm:$0xf]
    %v279 = vld [vmem:[#allocation5 + $0x3c] sm:$0xf]
    %v280 = vld [vmem:[%s6] sm:$0x1]
    %v282 = vlaneseq
    %v283 = vshrl.u32 %v282, 7
    %v284 = vsub.s32 0, %v283
    %v285 = vrot.slane %v280, %v284
    %v303 = vunpack.c.l.b16 %v264
    %v304 = vunpack.c.l.b16 %v265
    %v305 = vunpack.c.l.b16 %v266
    %v306 = vunpack.c.l.b16 %v267
    %v307 = vunpack.c.l.b16 %v268
    %v308 = vunpack.c.l.b16 %v269
    %v309 = vunpack.c.l.b16 %v270
    %v310 = vunpack.c.l.b16 %v271
    %v311 = vunpack.c.l.b16 %v272
    %v312 = vunpack.c.l.b16 %v273
    %v313 = vunpack.c.l.b16 %v274
    %v314 = vunpack.c.l.b16 %v275
    %v315 = vunpack.c.l.b16 %v276
    %v316 = vunpack.c.l.b16 %v277
    %v317 = vunpack.c.l.b16 %v278
    %v318 = vunpack.c.l.b16 %v279
    %v319 = vpack.c.b16 %v304, %v303
    %v320 = vpack.c.b16 %v306, %v305
    %v321 = vpack.c.b16 %v308, %v307
    %v322 = vpack.c.b16 %v310, %v309
    %v323 = vpack.c.b16 %v312, %v311
    %v324 = vpack.c.b16 %v314, %v313
    %v325 = vpack.c.b16 %v316, %v315
    %v326 = vpack.c.b16 %v318, %v317
    %335 = vmatprep.subr.bf16.mxu0 0
    %336 = vmatpush1.bf16.msra.mxu0 %v319
    %337 = vmatprep.subr.bf16.mxu0 0
    %338 = vmatpush1.bf16.msra.mxu0 %v320
    %339 = vmatprep.subr.bf16.mxu0 0
    %340 = vmatpush1.bf16.msra.mxu0 %v321
    %341 = vmatprep.subr.bf16.mxu0 0
    %342 = vmatpush1.bf16.msra.mxu0 %v322
    %343 = vmatprep.subr.bf16.mxu0 0
    %344 = vmatpush1.bf16.msra.mxu0 %v323
    %345 = vmatprep.subr.bf16.mxu0 0
    %346 = vmatpush1.bf16.msra.mxu0 %v324
    %347 = vmatprep.subr.bf16.mxu0 0
    %348 = vmatpush1.bf16.msra.mxu0 %v325
    %349 = vmatprep.subr.bf16.mxu0 0
    %350 = vmatpush1.bf16.msra.mxu0 %v326
    %351 = vmatprep.subr.bf16.mxu0 0
    %352 = vmatpush1.bf16.msra.mxu0 0
    %353 = vmatprep.subr.bf16.mxu0 0
    %354 = vmatpush1.bf16.msra.mxu0 0
    %355 = vmatprep.subr.bf16.mxu0 0
    %356 = vmatpush1.bf16.msra.mxu0 0
    %357 = vmatprep.subr.bf16.mxu0 0
    %358 = vmatpush1.bf16.msra.mxu0 0
    %359 = vmatprep.subr.bf16.mxu0 0
    %360 = vmatpush1.bf16.msra.mxu0 0
    %361 = vmatprep.subr.bf16.mxu0 0
    %362 = vmatpush1.bf16.msra.mxu0 0
    %363 = vmatprep.subr.bf16.mxu0 0
    %364 = vmatpush1.bf16.msra.mxu0 0
    %365 = vmatprep.subr.bf16.mxu0 0
    %366 = vmatpush1.bf16.msra.mxu0 0
    %367 = vmatprep.mubr.bf16.mxu0 0
    %368 = vmatmul.mubr.bf16.gmra.mrb[0].mxu0 %v263
    %v369 = vpop.f32.mrb[0].mxu0
    %v370 = vadd.f32 %v285, %v369
    %v371 = vpop.f32.mrb[0].mxu0
    %v372 = vpop.f32.mrb[0].mxu0
    %v373 = vadd.f32 %v285, %v372
    %v374 = vpop.f32.mrb[0].mxu0
    %375 = vdwg.mxu0
    %v376 = vmax.f32 %v370, 0.0
    %v377 = vmax.f32 %v373, 0.0
    %v378 = vpack.c.bf16 %v377, %v376
    %v379 = vld [vmem:[#allocation7] sm:$0xf]
    %v380 = vld [vmem:[#allocation7 + $0x4] sm:$0xf]
    %v381 = vld [vmem:[#allocation7 + $0x8] sm:$0xf]
    %v382 = vld [vmem:[#allocation7 + $0xc] sm:$0xf]
    %v383 = vld [vmem:[#allocation7 + $0x10] sm:$0xf]
    %v384 = vld [vmem:[#allocation7 + $0x14] sm:$0xf]
    %v385 = vld [vmem:[#allocation7 + $0x18] sm:$0xf]
    %v386 = vld [vmem:[#allocation7 + $0x1c] sm:$0xf]
    %v387 = vld [vmem:[#allocation7 + $0x20] sm:$0xf]
    %v388 = vld [vmem:[#allocation7 + $0x24] sm:$0xf]
    %v389 = vld [vmem:[#allocation7 + $0x28] sm:$0xf]
    %v390 = vld [vmem:[#allocation7 + $0x2c] sm:$0xf]
    %v391 = vld [vmem:[#allocation7 + $0x30] sm:$0xf]
    %v392 = vld [vmem:[#allocation7 + $0x34] sm:$0xf]
    %v393 = vld [vmem:[#allocation7 + $0x38] sm:$0xf]
    %v394 = vld [vmem:[#allocation7 + $0x3c] sm:$0xf]
    %v395 = vld [vmem:[%s8] sm:$0x1]
    %v397 = vlaneseq
    %v398 = vshrl.u32 %v397, 7
    %v399 = vsub.s32 0, %v398
    %v400 = vrot.slane %v395, %v399
    %v418 = vunpack.c.l.b16 %v379
    %v419 = vunpack.c.l.b16 %v380
    %v420 = vunpack.c.l.b16 %v381
    %v421 = vunpack.c.l.b16 %v382
    %v422 = vunpack.c.l.b16 %v383
    %v423 = vunpack.c.l.b16 %v384
    %v424 = vunpack.c.l.b16 %v385
    %v425 = vunpack.c.l.b16 %v386
    %v426 = vunpack.c.l.b16 %v387
    %v427 = vunpack.c.l.b16 %v388
    %v428 = vunpack.c.l.b16 %v389
    %v429 = vunpack.c.l.b16 %v390
    %v430 = vunpack.c.l.b16 %v391
    %v431 = vunpack.c.l.b16 %v392
    %v432 = vunpack.c.l.b16 %v393
    %v433 = vunpack.c.l.b16 %v394
    %v434 = vpack.c.b16 %v419, %v418
    %v435 = vpack.c.b16 %v421, %v420
    %v436 = vpack.c.b16 %v423, %v422
    %v437 = vpack.c.b16 %v425, %v424
    %v438 = vpack.c.b16 %v427, %v426
    %v439 = vpack.c.b16 %v429, %v428
    %v440 = vpack.c.b16 %v431, %v430
    %v441 = vpack.c.b16 %v433, %v432
    %450 = vmatprep.subr.bf16.mxu0 0
    %451 = vmatpush1.bf16.msra.mxu0 %v434
    %452 = vmatprep.subr.bf16.mxu0 0
    %453 = vmatpush1.bf16.msra.mxu0 %v435
    %454 = vmatprep.subr.bf16.mxu0 0
    %455 = vmatpush1.bf16.msra.mxu0 %v436
    %456 = vmatprep.subr.bf16.mxu0 0
    %457 = vmatpush1.bf16.msra.mxu0 %v437
    %458 = vmatprep.subr.bf16.mxu0 0
    %459 = vmatpush1.bf16.msra.mxu0 %v438
    %460 = vmatprep.subr.bf16.mxu0 0
    %461 = vmatpush1.bf16.msra.mxu0 %v439
    %462 = vmatprep.subr.bf16.mxu0 0
    %463 = vmatpush1.bf16.msra.mxu0 %v440
    %464 = vmatprep.subr.bf16.mxu0 0
    %465 = vmatpush1.bf16.msra.mxu0 %v441
    %466 = vmatprep.subr.bf16.mxu0 0
    %467 = vmatpush1.bf16.msra.mxu0 0
    %468 = vmatprep.subr.bf16.mxu0 0
    %469 = vmatpush1.bf16.msra.mxu0 0
    %470 = vmatprep.subr.bf16.mxu0 0
    %471 = vmatpush1.bf16.msra.mxu0 0
    %472 = vmatprep.subr.bf16.mxu0 0
    %473 = vmatpush1.bf16.msra.mxu0 0
    %474 = vmatprep.subr.bf16.mxu0 0
    %475 = vmatpush1.bf16.msra.mxu0 0
    %476 = vmatprep.subr.bf16.mxu0 0
    %477 = vmatpush1.bf16.msra.mxu0 0
    %478 = vmatprep.subr.bf16.mxu0 0
    %479 = vmatpush1.bf16.msra.mxu0 0
    %480 = vmatprep.subr.bf16.mxu0 0
    %481 = vmatpush1.bf16.msra.mxu0 0
    %482 = vmatprep.mubr.bf16.mxu0 0
    %483 = vmatmul.mubr.bf16.gmra.mrb[0].mxu0 %v378
    %v484 = vpop.f32.mrb[0].mxu0
    %v485 = vadd.f32 %v400, %v484
    %v486 = vpop.f32.mrb[0].mxu0
    %v487 = vpop.f32.mrb[0].mxu0
    %v488 = vadd.f32 %v400, %v487
    %v489 = vpop.f32.mrb[0].mxu0
    %490 = vdwg.mxu0
    %v491 = vpack.c.bf16 %v488, %v485
    %v493 = vunpack.c.l.b16 %v491
    %v494 = vunpack.c.h.b16 %v491
    %v495 = vpack.c.b16 %v493, %v493
    %v496 = vpack.c.b16 %v494, %v494
    %499 = vst [vmem:[#allocation8] sm:$0xf] %v495
    %500 = vst [vmem:[#allocation8 + $0x4] sm:$0xf] %v496
    // Predicated region
    $region50: #{competitive_dqn_forward_padded.1} parent=1 // pred_check
      _
    $region51: #{competitive_dqn_forward_padded.1} parent=1 // pred_check_branch
      %502 = sbr.rel (0) target = $region53
    $region52: #{competitive_dqn_forward_padded.1} parent=1 // pred_region
      %s504 = ssub.s32 128, 128
      %505 = vsyncadd [#allocation4], %s504
      %s506 = sshll.u32 [#allocation8], 4
      %s507 = int_to_ptr.vmem [resolvable:$true] %s506
      %512 = dma.vmem_to_hbm [thread:$0]  %s507, 128, %s9, [#allocation4], 64, 64, 4
    $region53: #{competitive_dqn_forward_padded.1} parent=1 // pred_fallthru
      _
    // Predicated region
    $region54: #{competitive_dqn_forward_padded.1} parent=1 // pred_check
      _
    $region55: #{competitive_dqn_forward_padded.1} parent=1 // pred_check_branch
      %514 = sbr.rel (0) target = $region57
    $region56: #{competitive_dqn_forward_padded.1} parent=1 // pred_region
      %515 = dma.done [#allocation4], 128
    $region57: #{competitive_dqn_forward_padded.1} parent=1 // pred_fallthru
      _
    %516 = vsyncpa [#allocation3], 1
    %517 = vsyncpa [#allocation6], 1
    %518 = vsyncpa [#allocation4], 1

</llo_original>
